<compile_context>
chip_gen: v5e
topology: v5e:2x2
jax: 0.10.0
libtpu: 0.0.40
codegen_flags: <defaults>
</compile_context>

<pallas_src>
import jax
import jax.numpy as jnp
from jax.experimental import pallas as pl
from jax.experimental.pallas import tpu as pltpu


# -----------------------------------------------------------------------------
# Helpers
# -----------------------------------------------------------------------------
def _round_up(n, m):
    return ((n + m - 1) // m) * m


def _device_kind():
    try:
        return jax.devices()[0].device_kind.lower()
    except Exception:  # pragma: no cover - defensive
        return ""


def _auto_config(R, in_dim, mod_dims, compute_dtype, out_dtype, weight_bytes):
    """Pick (row_tile, vmem_limit_bytes) per TPU generation."""
    kind = _device_kind()
    is_v7 = "v7" in kind
    is_v6 = "v6" in kind
    # Physical VMEM: 128 MiB on v5e/v6e, 64 MiB per TensorCore on v7x.
    vmem_limit = (48 if is_v7 else 64) * 1024 * 1024
    if is_v7:
        # Two TensorCores: keep >=2 (preferably 4) grid steps so the "parallel"
        # row axis actually shards, and keep tiles modest for 64 MiB VMEM.
        desired = min(512, max(8, _round_up(pl.cdiv(R, 4), 8)))
    elif is_v6:
        desired = 1024   # single TC, 128 MiB VMEM: amortize per-step overhead
    else:
        desired = 512    # v5e: kernel is bandwidth/overhead-bound, not M-bound
    cb = jnp.dtype(compute_dtype).itemsize
    ob = jnp.dtype(out_dtype).itemsize
    d_sum, d_max = sum(mod_dims), max(mod_dims)
    # Rough per-row VMEM: double-buffered x block + double-buffered per-layer
    # output blocks + f32 accumulator / compute-dtype "prev" temporaries.
    per_row = (2 * in_dim * cb + 2 * d_sum * ob
               + 4 * d_max + cb * d_max + 4 * in_dim)
    budget = int(0.75 * vmem_limit) - 2 * weight_bytes
    cap = max(8, (budget // max(per_row, 1)) // 8 * 8)
    tile = int(max(8, min(desired, cap, _round_up(R, 8))))
    return tile, vmem_limit


def _prepared_bytes(prepared):
    total = 0
    for tensors in prepared:
        for a in tensors:
            if a is not None:
                total += int(a.size) * a.dtype.itemsize
    return total


# -----------------------------------------------------------------------------
# One-time parameter preparation (hoisted out of the forward pass).
#
# params[i] = (W, b) with W: (in_features_i, mod_dims[i]) -- i.e. already
# transposed vs. PyTorch's (out, in) layout -- and b: (mod_dims[i],).
# For i > 0, in_features_i = mod_dims[i-1] + in_dim and the FIRST mod_dims[i-1]
# rows multiply the previous block output; this matches
# torch.cat([out, input], dim=-1).  Verify that ordering on checkpoint import.
# -----------------------------------------------------------------------------
def prepare_params(params, in_dim, compute_dtype=jnp.bfloat16):
    prepared = []
    prev_d = 0
    for i, (W, b) in enumerate(params):
        d = int(b.shape[0])
        W = jnp.asarray(W)
        b2 = jnp.asarray(b, jnp.float32).reshape(1, d)
        if i == 0:
            assert W.shape == (in_dim, d), W.shape
            prepared.append((None, W.astype(compute_dtype), b2))
        else:
            assert W.shape == (prev_d + in_dim, d), W.shape
            prepared.append((W[:prev_d].astype(compute_dtype),
                             W[prev_d:].astype(compute_dtype), b2))
        prev_d = d
    return prepared


# -----------------------------------------------------------------------------
# Fused kernel: all layers of the ModulationNetwork on one row tile.
# refs = (x_ref, <layer params...>, out_ref_0, ..., out_ref_{L-1})
#   layer 0     : Wx0, b0
#   layer i > 0 : Wp_i, Wx_i, b_i
# -----------------------------------------------------------------------------
def _make_fused_kernel(n_layers, compute_dtype):
    def kernel(*refs):
        x_ref = refs[0]
        out_refs = refs[-n_layers:]
        w_refs = refs[1:-n_layers]

        prev = None
        idx = 0
        for i in range(n_layers):
            # Re-read x per layer (cheap VMEM reload, hides under MXU) instead
            # of keeping one copy live across the whole unrolled stack.
            xi = x_ref[...].astype(compute_dtype)
            if i == 0:
                wx, b = w_refs[idx], w_refs[idx + 1]
                idx += 2
                acc = jnp.dot(xi, wx[...], preferred_element_type=jnp.float32)
            else:
                wp, wx, b = w_refs[idx], w_refs[idx + 1], w_refs[idx + 2]
                idx += 3
                acc = jnp.dot(prev, wp[...], preferred_element_type=jnp.float32)
                acc = acc + jnp.dot(xi, wx[...], preferred_element_type=jnp.float32)
            # Bias + ReLU epilogue in f32 (VPU), store exactly d_i lanes.
            y = jnp.maximum(acc + b[...], 0.0)
            out_refs[i][...] = y.astype(out_refs[i].dtype)
            prev = y.astype(compute_dtype)

    return kernel


# -----------------------------------------------------------------------------
# Forward: single fused pallas_call over row tiles (no padding, ragged grid).
# -----------------------------------------------------------------------------
def modulation_network_forward(x, prepared, *, row_tile=None, out_dtype=None,
                               vmem_limit_bytes=None, single_buffer_weights=True):
    """
    x: (..., in_dim); prepared: output of prepare_params.
    Returns list of mods, mods[i]: (..., mod_dims[i]) in `out_dtype`
    (defaults to x.dtype).
    """
    if out_dtype is None:
        out_dtype = x.dtype
    compute_dtype = prepared[0][1].dtype
    mod_dims = [int(t[2].shape[-1]) for t in prepared]
    n_layers = len(prepared)

    lead_shape = x.shape[:-1]
    in_dim = x.shape[-1]
    x2 = x.reshape(-1, in_dim)          # no padded copy: ragged last grid block
    R = x2.shape[0]

    auto_tile, auto_vmem = _auto_config(R, in_dim, mod_dims, compute_dtype,
                                        out_dtype, _prepared_bytes(prepared))
    if row_tile is None:
        row_tile = auto_tile
    row_tile = max(8, (int(row_tile) // 8) * 8)
    if vmem_limit_bytes is None:
        vmem_limit_bytes = auto_vmem
    grid = (pl.cdiv(R, row_tile),)

    kernel = _make_fused_kernel(n_layers, compute_dtype)
    out_shape = tuple(jax.ShapeDtypeStruct((R, d), out_dtype) for d in mod_dims)
    out_specs = [pl.BlockSpec((row_tile, d), lambda i: (i, 0)) for d in mod_dims]

    def _run(single_buffer):
        def const_spec(shape):
            # Constant-index block: never refetched, so request 1 buffer
            # (saves VMEM -> headroom for bigger row tiles).
            if single_buffer:
                return pl.BlockSpec(shape, lambda i: (0, 0),
                                    pipeline_mode=pl.Buffered(1))
            return pl.BlockSpec(shape, lambda i: (0, 0))

        flat_args = [x2]
        in_specs = [pl.BlockSpec((row_tile, in_dim), lambda i: (i, 0))]
        for (wp, wx, b) in prepared:
            if wp is not None:
                flat_args.append(wp)
                in_specs.append(const_spec(wp.shape))
            flat_args += [wx, b]
            in_specs += [const_spec(wx.shape), const_spec(b.shape)]

        return pl.pallas_call(
            kernel,
            out_shape=out_shape,
            grid_spec=pltpu.PrefetchScalarGridSpec(
                num_scalar_prefetch=0,
                grid=grid,
                in_specs=in_specs,
                out_specs=out_specs,
            ),
            compiler_params=pltpu.CompilerParams(
                dimension_semantics=("parallel",),
                vmem_limit_bytes=int(vmem_limit_bytes),
            ),
        )(*flat_args)

    if single_buffer_weights:
        try:
            outs = _run(True)
        except Exception:
            # pipeline_mode=pl.Buffered(1) unsupported on this jax/mosaic
            # version -> fall back to default (double-buffered) weight specs.
            outs = _run(False)
    else:
        outs = _run(False)

    return [o.reshape(*lead_shape, d) for o, d in zip(outs, mod_dims)]


# -----------------------------------------------------------------------------
# Deterministic parameter init (mirrors nn.Linear default: uniform(-k, k),
# k = 1/sqrt(fan_in)); weight stored as (in_features, out_features).
# -----------------------------------------------------------------------------
def init_params(key, in_dim, mod_dims, dtype=jnp.float32):
    params = []
    prev = 0
    for i, d in enumerate(mod_dims):
        fan_in = in_dim + (prev if i else 0)
        key, kw, kb = jax.random.split(key, 3)
        bound = 1.0 / jnp.sqrt(jnp.asarray(fan_in, dtype))
        W = jax.random.uniform(kw, (fan_in, d), dtype, -bound, bound)
        b = jax.random.uniform(kb, (d,), dtype, -bound, bound)
        params.append((W, b))
        prev = d
    return params


# -----------------------------------------------------------------------------
# Pure-JAX reference for verification.
# -----------------------------------------------------------------------------
def reference_forward(x, params):
    lead_shape = x.shape[:-1]
    x2 = x.reshape(-1, x.shape[-1])
    out = x2
    mods = []
    for (W, b) in params:
        out = jnp.maximum(out @ W + b, 0.0)
        mods.append(out.reshape(*lead_shape, out.shape[-1]))
        out = jnp.concatenate([out, x2], axis=-1)
    return mods


if __name__ == "__main__":
    key = jax.random.PRNGKey(0)
    batch, seq, in_dim = 2, 8, 32
    mod_dims = [64, 48, 32]

    key, kx = jax.random.split(key)
    x = jax.random.normal(kx, (batch, seq, in_dim), jnp.float32)
    params = init_params(key, in_dim, mod_dims)

    refs = reference_forward(x, params)

    # --- exact f32 path (opt-in) ---------------------------------------------
    # NOTE: uses the default TPU matmul precision; K is small here so 1e-5
    # holds.  For strict bit-parity with PyTorch f32 at large K, a HIGHEST-
    # precision dot would be needed.
    prepared_f32 = prepare_params(params, in_dim, compute_dtype=jnp.float32)
    mods = modulation_network_forward(x, prepared_f32)
    mods = [jax.block_until_ready(m) for m in mods]
    for m, r, d in zip(mods, refs, mod_dims):
        assert m.shape == (batch, seq, d), (m.shape, d)
        assert jnp.allclose(m, r, atol=1e-5, rtol=1e-5), "f32 mismatch vs reference"

    # --- default bf16-compute path (f32 accumulation + f32 epilogue) ----------
    # Intermediates are bf16 between layers, so tolerance is loosened vs the
    # PyTorch f32 cat path.
    prepared_bf16 = prepare_params(params, in_dim)          # bf16 by default
    mods_bf16 = modulation_network_forward(x, prepared_bf16)
    mods_bf16 = [jax.block_until_ready(m) for m in mods_bf16]
    for m, r, d in zip(mods_bf16, refs, mod_dims):
        assert m.shape == (batch, seq, d), (m.shape, d)
        assert jnp.allclose(m, r, atol=5e-2, rtol=5e-2), "bf16 mismatch vs reference"

    print("KERNEL_OK")
</pallas_src>

<mosaic_0001>
module attributes {stable_mosaic.version = 11 : i64} {
  func.func @kernel(%arg0: i32, %arg1: memref<16x32xf32, #tpu.memory_space<vmem>>, %arg2: memref<32x64xf32, #tpu.memory_space<vmem>>, %arg3: memref<1x64xf32, #tpu.memory_space<vmem>>, %arg4: memref<64x48xf32, #tpu.memory_space<vmem>>, %arg5: memref<32x48xf32, #tpu.memory_space<vmem>>, %arg6: memref<1x48xf32, #tpu.memory_space<vmem>>, %arg7: memref<48x32xf32, #tpu.memory_space<vmem>>, %arg8: memref<32x32xf32, #tpu.memory_space<vmem>>, %arg9: memref<1x32xf32, #tpu.memory_space<vmem>>, %arg10: memref<16x64xf32, #tpu.memory_space<vmem>>, %arg11: memref<16x48xf32, #tpu.memory_space<vmem>>, %arg12: memref<16x32xf32, #tpu.memory_space<vmem>>) attributes {dimension_semantics = [#tpu.dimension_semantics<parallel>], iteration_bounds = array<i64: 1>, scalar_prefetch = 0 : i64, scratch_operands = 0 : i64, tpu.core_type = #tpu.core_type<tc>, window_params = [{transform_indices = @transform_0, window_bounds = array<i64: 16, 32>}, {pipeline_mode = #tpu.pipeline_mode<synchronous>, transform_indices = @transform_1, window_bounds = array<i64: 32, 64>}, {pipeline_mode = #tpu.pipeline_mode<synchronous>, transform_indices = @transform_2, window_bounds = array<i64: 1, 64>}, {pipeline_mode = #tpu.pipeline_mode<synchronous>, transform_indices = @transform_3, window_bounds = array<i64: 64, 48>}, {pipeline_mode = #tpu.pipeline_mode<synchronous>, transform_indices = @transform_4, window_bounds = array<i64: 32, 48>}, {pipeline_mode = #tpu.pipeline_mode<synchronous>, transform_indices = @transform_5, window_bounds = array<i64: 1, 48>}, {pipeline_mode = #tpu.pipeline_mode<synchronous>, transform_indices = @transform_6, window_bounds = array<i64: 48, 32>}, {pipeline_mode = #tpu.pipeline_mode<synchronous>, transform_indices = @transform_7, window_bounds = array<i64: 32, 32>}, {pipeline_mode = #tpu.pipeline_mode<synchronous>, transform_indices = @transform_8, window_bounds = array<i64: 1, 32>}, {transform_indices = @transform_9, window_bounds = array<i64: 16, 64>}, {transform_indices = @transform_10, window_bounds = array<i64: 16, 48>}, {transform_indices = @transform_11, window_bounds = array<i64: 16, 32>}]} {
    %c0 = arith.constant 0 : index
    %c0_0 = arith.constant 0 : index
    %0 = vector.load %arg1[%c0, %c0_0] : memref<16x32xf32, #tpu.memory_space<vmem>>, vector<16x32xf32>
    %c0_1 = arith.constant 0 : index
    %c0_2 = arith.constant 0 : index
    %1 = vector.load %arg2[%c0_1, %c0_2] : memref<32x64xf32, #tpu.memory_space<vmem>>, vector<32x64xf32>
    %cst = arith.constant dense<0.000000e+00> : vector<16x64xf32>
    %2 = tpu.matmul %0, %1, %cst {dimension_numbers = #tpu.dot_dimension_numbers<[1], [0], [0], [1], [0, 0, 1, 1], [], []>} : vector<16x32xf32>, vector<32x64xf32>, vector<16x64xf32> -> vector<16x64xf32>
    %c0_3 = arith.constant 0 : index
    %c0_4 = arith.constant 0 : index
    %3 = vector.load %arg3[%c0_3, %c0_4] : memref<1x64xf32, #tpu.memory_space<vmem>>, vector<1x64xf32>
    %4 = vector.broadcast %3 : vector<1x64xf32> to vector<16x64xf32>
    %5 = arith.addf %2, %4 : vector<16x64xf32>
    %cst_5 = arith.constant 0.000000e+00 : f32
    %6 = vector.broadcast %cst_5 : f32 to vector<16x64xf32>
    %7 = arith.maximumf %5, %6 : vector<16x64xf32>
    %c0_6 = arith.constant 0 : index
    %c0_7 = arith.constant 0 : index
    %8 = vector.load %arg10[%c0_6, %c0_7] : memref<16x64xf32, #tpu.memory_space<vmem>>, vector<16x64xf32>
    tpu.vector_store %arg10[%c0_6, %c0_7], %7 {strides = array<i32>} : memref<16x64xf32, #tpu.memory_space<vmem>>, vector<16x64xf32>,
    %c0_8 = arith.constant 0 : index
    %c0_9 = arith.constant 0 : index
    %9 = vector.load %arg1[%c0_8, %c0_9] : memref<16x32xf32, #tpu.memory_space<vmem>>, vector<16x32xf32>
    %c0_10 = arith.constant 0 : index
    %c0_11 = arith.constant 0 : index
    %10 = vector.load %arg4[%c0_10, %c0_11] : memref<64x48xf32, #tpu.memory_space<vmem>>, vector<64x48xf32>
    %cst_12 = arith.constant dense<0.000000e+00> : vector<16x48xf32>
    %11 = tpu.matmul %7, %10, %cst_12 {dimension_numbers = #tpu.dot_dimension_numbers<[1], [0], [0], [1], [0, 0, 1, 1], [], []>} : vector<16x64xf32>, vector<64x48xf32>, vector<16x48xf32> -> vector<16x48xf32>
    %c0_13 = arith.constant 0 : index
    %c0_14 = arith.constant 0 : index
    %12 = vector.load %arg5[%c0_13, %c0_14] : memref<32x48xf32, #tpu.memory_space<vmem>>, vector<32x48xf32>
    %cst_15 = arith.constant dense<0.000000e+00> : vector<16x48xf32>
    %13 = tpu.matmul %9, %12, %cst_15 {dimension_numbers = #tpu.dot_dimension_numbers<[1], [0], [0], [1], [0, 0, 1, 1], [], []>} : vector<16x32xf32>, vector<32x48xf32>, vector<16x48xf32> -> vector<16x48xf32>
    %14 = arith.addf %11, %13 : vector<16x48xf32>
    %c0_16 = arith.constant 0 : index
    %c0_17 = arith.constant 0 : index
    %15 = vector.load %arg6[%c0_16, %c0_17] : memref<1x48xf32, #tpu.memory_space<vmem>>, vector<1x48xf32>
    %16 = vector.broadcast %15 : vector<1x48xf32> to vector<16x48xf32>
    %17 = arith.addf %14, %16 : vector<16x48xf32>
    %cst_18 = arith.constant 0.000000e+00 : f32
    %18 = vector.broadcast %cst_18 : f32 to vector<16x48xf32>
    %19 = arith.maximumf %17, %18 : vector<16x48xf32>
    %c0_19 = arith.constant 0 : index
    %c0_20 = arith.constant 0 : index
    %20 = vector.load %arg11[%c0_19, %c0_20] : memref<16x48xf32, #tpu.memory_space<vmem>>, vector<16x48xf32>
    tpu.vector_store %arg11[%c0_19, %c0_20], %19 {strides = array<i32>} : memref<16x48xf32, #tpu.memory_space<vmem>>, vector<16x48xf32>,
    %c0_21 = arith.constant 0 : index
    %c0_22 = arith.constant 0 : index
    %21 = vector.load %arg1[%c0_21, %c0_22] : memref<16x32xf32, #tpu.memory_space<vmem>>, vector<16x32xf32>
    %c0_23 = arith.constant 0 : index
    %c0_24 = arith.constant 0 : index
    %22 = vector.load %arg7[%c0_23, %c0_24] : memref<48x32xf32, #tpu.memory_space<vmem>>, vector<48x32xf32>
    %cst_25 = arith.constant dense<0.000000e+00> : vector<16x32xf32>
    %23 = tpu.matmul %19, %22, %cst_25 {dimension_numbers = #tpu.dot_dimension_numbers<[1], [0], [0], [1], [0, 0, 1, 1], [], []>} : vector<16x48xf32>, vector<48x32xf32>, vector<16x32xf32> -> vector<16x32xf32>
    %c0_26 = arith.constant 0 : index
    %c0_27 = arith.constant 0 : index
    %24 = vector.load %arg8[%c0_26, %c0_27] : memref<32x32xf32, #tpu.memory_space<vmem>>, vector<32x32xf32>
    %cst_28 = arith.constant dense<0.000000e+00> : vector<16x32xf32>
    %25 = tpu.matmul %21, %24, %cst_28 {dimension_numbers = #tpu.dot_dimension_numbers<[1], [0], [0], [1], [0, 0, 1, 1], [], []>} : vector<16x32xf32>, vector<32x32xf32>, vector<16x32xf32> -> vector<16x32xf32>
    %26 = arith.addf %23, %25 : vector<16x32xf32>
    %c0_29 = arith.constant 0 : index
    %c0_30 = arith.constant 0 : index
    %27 = vector.load %arg9[%c0_29, %c0_30] : memref<1x32xf32, #tpu.memory_space<vmem>>, vector<1x32xf32>
    %28 = vector.broadcast %27 : vector<1x32xf32> to vector<16x32xf32>
    %29 = arith.addf %26, %28 : vector<16x32xf32>
    %cst_31 = arith.constant 0.000000e+00 : f32
    %30 = vector.broadcast %cst_31 : f32 to vector<16x32xf32>
    %31 = arith.maximumf %29, %30 : vector<16x32xf32>
    %c0_32 = arith.constant 0 : index
    %c0_33 = arith.constant 0 : index
    %32 = vector.load %arg12[%c0_32, %c0_33] : memref<16x32xf32, #tpu.memory_space<vmem>>, vector<16x32xf32>
    tpu.vector_store %arg12[%c0_32, %c0_33], %31 {strides = array<i32>} : memref<16x32xf32, #tpu.memory_space<vmem>>, vector<16x32xf32>,
    return
  }
  func.func @transform_0(%arg0: i32) -> (i32, i32) {
    %c0_i32 = arith.constant 0 : i32
    %c0_i32_0 = arith.constant 0 : i32
    return %arg0, %c0_i32 : i32, i32
  }
  func.func @transform_1(%arg0: i32) -> (i32, i32) {
    %c0_i32 = arith.constant 0 : i32
    %c0_i32_0 = arith.constant 0 : i32
    %c0_i32_1 = arith.constant 0 : i32
    return %c0_i32, %c0_i32_0 : i32, i32
  }
  func.func @transform_2(%arg0: i32) -> (i32, i32) {
    %c0_i32 = arith.constant 0 : i32
    %c0_i32_0 = arith.constant 0 : i32
    %c0_i32_1 = arith.constant 0 : i32
    return %c0_i32, %c0_i32_0 : i32, i32
  }
  func.func @transform_3(%arg0: i32) -> (i32, i32) {
    %c0_i32 = arith.constant 0 : i32
    %c0_i32_0 = arith.constant 0 : i32
    %c0_i32_1 = arith.constant 0 : i32
    return %c0_i32, %c0_i32_0 : i32, i32
  }
  func.func @transform_4(%arg0: i32) -> (i32, i32) {
    %c0_i32 = arith.constant 0 : i32
    %c0_i32_0 = arith.constant 0 : i32
    %c0_i32_1 = arith.constant 0 : i32
    return %c0_i32, %c0_i32_0 : i32, i32
  }
  func.func @transform_5(%arg0: i32) -> (i32, i32) {
    %c0_i32 = arith.constant 0 : i32
    %c0_i32_0 = arith.constant 0 : i32
    %c0_i32_1 = arith.constant 0 : i32
    return %c0_i32, %c0_i32_0 : i32, i32
  }
  func.func @transform_6(%arg0: i32) -> (i32, i32) {
    %c0_i32 = arith.constant 0 : i32
    %c0_i32_0 = arith.constant 0 : i32
    %c0_i32_1 = arith.constant 0 : i32
    return %c0_i32, %c0_i32_0 : i32, i32
  }
  func.func @transform_7(%arg0: i32) -> (i32, i32) {
    %c0_i32 = arith.constant 0 : i32
    %c0_i32_0 = arith.constant 0 : i32
    %c0_i32_1 = arith.constant 0 : i32
    return %c0_i32, %c0_i32_0 : i32, i32
  }
  func.func @transform_8(%arg0: i32) -> (i32, i32) {
    %c0_i32 = arith.constant 0 : i32
    %c0_i32_0 = arith.constant 0 : i32
    %c0_i32_1 = arith.constant 0 : i32
    return %c0_i32, %c0_i32_0 : i32, i32
  }
  func.func @transform_9(%arg0: i32) -> (i32, i32) {
    %c0_i32 = arith.constant 0 : i32
    %c0_i32_0 = arith.constant 0 : i32
    return %arg0, %c0_i32 : i32, i32
  }
  func.func @transform_10(%arg0: i32) -> (i32, i32) {
    %c0_i32 = arith.constant 0 : i32
    %c0_i32_0 = arith.constant 0 : i32
    return %arg0, %c0_i32 : i32, i32
  }
  func.func @transform_11(%arg0: i32) -> (i32, i32) {
    %c0_i32 = arith.constant 0 : i32
    %c0_i32_0 = arith.constant 0 : i32
    return %arg0, %c0_i32 : i32, i32
  }
}

module attributes {stable_mosaic.version = 11 : i64} {
  func.func @kernel(%arg0: i32, %arg1: memref<16x32xf32, #tpu.memory_space<vmem>>, %arg2: memref<32x64xf32, #tpu.memory_space<vmem>>, %arg3: memref<1x64xf32, #tpu.memory_space<vmem>>, %arg4: memref<64x48xf32, #tpu.memory_space<vmem>>, %arg5: memref<32x48xf32, #tpu.memory_space<vmem>>, %arg6: memref<1x48xf32, #tpu.memory_space<vmem>>, %arg7: memref<48x32xf32, #tpu.memory_space<vmem>>, %arg8: memref<32x32xf32, #tpu.memory_space<vmem>>, %arg9: memref<1x32xf32, #tpu.memory_space<vmem>>, %arg10: memref<16x64xf32, #tpu.memory_space<vmem>>, %arg11: memref<16x48xf32, #tpu.memory_space<vmem>>, %arg12: memref<16x32xf32, #tpu.memory_space<vmem>>) attributes {dimension_semantics = [#tpu.dimension_semantics<parallel>], iteration_bounds = array<i64: 1>, scalar_prefetch = 0 : i64, scratch_operands = 0 : i64, tpu.core_type = #tpu.core_type<tc>, window_params = [{transform_indices = @transform_0, window_bounds = array<i64: 16, 32>}, {pipeline_mode = #tpu.pipeline_mode<synchronous>, transform_indices = @transform_1, window_bounds = array<i64: 32, 64>}, {pipeline_mode = #tpu.pipeline_mode<synchronous>, transform_indices = @transform_2, window_bounds = array<i64: 1, 64>}, {pipeline_mode = #tpu.pipeline_mode<synchronous>, transform_indices = @transform_3, window_bounds = array<i64: 64, 48>}, {pipeline_mode = #tpu.pipeline_mode<synchronous>, transform_indices = @transform_4, window_bounds = array<i64: 32, 48>}, {pipeline_mode = #tpu.pipeline_mode<synchronous>, transform_indices = @transform_5, window_bounds = array<i64: 1, 48>}, {pipeline_mode = #tpu.pipeline_mode<synchronous>, transform_indices = @transform_6, window_bounds = array<i64: 48, 32>}, {pipeline_mode = #tpu.pipeline_mode<synchronous>, transform_indices = @transform_7, window_bounds = array<i64: 32, 32>}, {pipeline_mode = #tpu.pipeline_mode<synchronous>, transform_indices = @transform_8, window_bounds = array<i64: 1, 32>}, {transform_indices = @transform_9, window_bounds = array<i64: 16, 64>}, {transform_indices = @transform_10, window_bounds = array<i64: 16, 48>}, {transform_indices = @transform_11, window_bounds = array<i64: 16, 32>}]} {
    %c0 = arith.constant 0 : index
    %c0_0 = arith.constant 0 : index
    %0 = vector.load %arg1[%c0, %c0_0] : memref<16x32xf32, #tpu.memory_space<vmem>>, vector<16x32xf32>
    %c0_1 = arith.constant 0 : index
    %c0_2 = arith.constant 0 : index
    %1 = vector.load %arg2[%c0_1, %c0_2] : memref<32x64xf32, #tpu.memory_space<vmem>>, vector<32x64xf32>
    %cst = arith.constant dense<0.000000e+00> : vector<16x64xf32>
    %2 = tpu.matmul %0, %1, %cst {dimension_numbers = #tpu.dot_dimension_numbers<[1], [0], [0], [1], [0, 0, 1, 1], [], []>} : vector<16x32xf32>, vector<32x64xf32>, vector<16x64xf32> -> vector<16x64xf32>
    %c0_3 = arith.constant 0 : index
    %c0_4 = arith.constant 0 : index
    %3 = vector.load %arg3[%c0_3, %c0_4] : memref<1x64xf32, #tpu.memory_space<vmem>>, vector<1x64xf32>
    %4 = vector.broadcast %3 : vector<1x64xf32> to vector<16x64xf32>
    %5 = arith.addf %2, %4 : vector<16x64xf32>
    %cst_5 = arith.constant 0.000000e+00 : f32
    %6 = vector.broadcast %cst_5 : f32 to vector<16x64xf32>
    %7 = arith.maximumf %5, %6 : vector<16x64xf32>
    %c0_6 = arith.constant 0 : index
    %c0_7 = arith.constant 0 : index
    %8 = vector.load %arg10[%c0_6, %c0_7] : memref<16x64xf32, #tpu.memory_space<vmem>>, vector<16x64xf32>
    tpu.vector_store %arg10[%c0_6, %c0_7], %7 {strides = array<i32>} : memref<16x64xf32, #tpu.memory_space<vmem>>, vector<16x64xf32>,
    %c0_8 = arith.constant 0 : index
    %c0_9 = arith.constant 0 : index
    %9 = vector.load %arg1[%c0_8, %c0_9] : memref<16x32xf32, #tpu.memory_space<vmem>>, vector<16x32xf32>
    %c0_10 = arith.constant 0 : index
    %c0_11 = arith.constant 0 : index
    %10 = vector.load %arg4[%c0_10, %c0_11] : memref<64x48xf32, #tpu.memory_space<vmem>>, vector<64x48xf32>
    %cst_12 = arith.constant dense<0.000000e+00> : vector<16x48xf32>
    %11 = tpu.matmul %7, %10, %cst_12 {dimension_numbers = #tpu.dot_dimension_numbers<[1], [0], [0], [1], [0, 0, 1, 1], [], []>} : vector<16x64xf32>, vector<64x48xf32>, vector<16x48xf32> -> vector<16x48xf32>
    %c0_13 = arith.constant 0 : index
    %c0_14 = arith.constant 0 : index
    %12 = vector.load %arg5[%c0_13, %c0_14] : memref<32x48xf32, #tpu.memory_space<vmem>>, vector<32x48xf32>
    %cst_15 = arith.constant dense<0.000000e+00> : vector<16x48xf32>
    %13 = tpu.matmul %9, %12, %cst_15 {dimension_numbers = #tpu.dot_dimension_numbers<[1], [0], [0], [1], [0, 0, 1, 1], [], []>} : vector<16x32xf32>, vector<32x48xf32>, vector<16x48xf32> -> vector<16x48xf32>
    %14 = arith.addf %11, %13 : vector<16x48xf32>
    %c0_16 = arith.constant 0 : index
    %c0_17 = arith.constant 0 : index
    %15 = vector.load %arg6[%c0_16, %c0_17] : memref<1x48xf32, #tpu.memory_space<vmem>>, vector<1x48xf32>
    %16 = vector.broadcast %15 : vector<1x48xf32> to vector<16x48xf32>
    %17 = arith.addf %14, %16 : vector<16x48xf32>
    %cst_18 = arith.constant 0.000000e+00 : f32
    %18 = vector.broadcast %cst_18 : f32 to vector<16x48xf32>
    %19 = arith.maximumf %17, %18 : vector<16x48xf32>
    %c0_19 = arith.constant 0 : index
    %c0_20 = arith.constant 0 : index
    %20 = vector.load %arg11[%c0_19, %c0_20] : memref<16x48xf32, #tpu.memory_space<vmem>>, vector<16x48xf32>
    tpu.vector_store %arg11[%c0_19, %c0_20], %19 {strides = array<i32>} : memref<16x48xf32, #tpu.memory_space<vmem>>, vector<16x48xf32>,
    %c0_21 = arith.constant 0 : index
    %c0_22 = arith.constant 0 : index
    %21 = vector.load %arg1[%c0_21, %c0_22] : memref<16x32xf32, #tpu.memory_space<vmem>>, vector<16x32xf32>
    %c0_23 = arith.constant 0 : index
    %c0_24 = arith.constant 0 : index
    %22 = vector.load %arg7[%c0_23, %c0_24] : memref<48x32xf32, #tpu.memory_space<vmem>>, vector<48x32xf32>
    %cst_25 = arith.constant dense<0.000000e+00> : vector<16x32xf32>
    %23 = tpu.matmul %19, %22, %cst_25 {dimension_numbers = #tpu.dot_dimension_numbers<[1], [0], [0], [1], [0, 0, 1, 1], [], []>} : vector<16x48xf32>, vector<48x32xf32>, vector<16x32xf32> -> vector<16x32xf32>
    %c0_26 = arith.constant 0 : index
    %c0_27 = arith.constant 0 : index
    %24 = vector.load %arg8[%c0_26, %c0_27] : memref<32x32xf32, #tpu.memory_space<vmem>>, vector<32x32xf32>
    %cst_28 = arith.constant dense<0.000000e+00> : vector<16x32xf32>
    %25 = tpu.matmul %21, %24, %cst_28 {dimension_numbers = #tpu.dot_dimension_numbers<[1], [0], [0], [1], [0, 0, 1, 1], [], []>} : vector<16x32xf32>, vector<32x32xf32>, vector<16x32xf32> -> vector<16x32xf32>
    %26 = arith.addf %23, %25 : vector<16x32xf32>
    %c0_29 = arith.constant 0 : index
    %c0_30 = arith.constant 0 : index
    %27 = vector.load %arg9[%c0_29, %c0_30] : memref<1x32xf32, #tpu.memory_space<vmem>>, vector<1x32xf32>
    %28 = vector.broadcast %27 : vector<1x32xf32> to vector<16x32xf32>
    %29 = arith.addf %26, %28 : vector<16x32xf32>
    %cst_31 = arith.constant 0.000000e+00 : f32
    %30 = vector.broadcast %cst_31 : f32 to vector<16x32xf32>
    %31 = arith.maximumf %29, %30 : vector<16x32xf32>
    %c0_32 = arith.constant 0 : index
    %c0_33 = arith.constant 0 : index
    %32 = vector.load %arg12[%c0_32, %c0_33] : memref<16x32xf32, #tpu.memory_space<vmem>>, vector<16x32xf32>
    tpu.vector_store %arg12[%c0_32, %c0_33], %31 {strides = array<i32>} : memref<16x32xf32, #tpu.memory_space<vmem>>, vector<16x32xf32>,
    return
  }
  func.func @transform_0(%arg0: i32) -> (i32, i32) {
    %c0_i32 = arith.constant 0 : i32
    %c0_i32_0 = arith.constant 0 : i32
    return %arg0, %c0_i32 : i32, i32
  }
  func.func @transform_1(%arg0: i32) -> (i32, i32) {
    %c0_i32 = arith.constant 0 : i32
    %c0_i32_0 = arith.constant 0 : i32
    %c0_i32_1 = arith.constant 0 : i32
    return %c0_i32, %c0_i32_0 : i32, i32
  }
  func.func @transform_2(%arg0: i32) -> (i32, i32) {
    %c0_i32 = arith.constant 0 : i32
    %c0_i32_0 = arith.constant 0 : i32
    %c0_i32_1 = arith.constant 0 : i32
    return %c0_i32, %c0_i32_0 : i32, i32
  }
  func.func @transform_3(%arg0: i32) -> (i32, i32) {
    %c0_i32 = arith.constant 0 : i32
    %c0_i32_0 = arith.constant 0 : i32
    %c0_i32_1 = arith.constant 0 : i32
    return %c0_i32, %c0_i32_0 : i32, i32
  }
  func.func @transform_4(%arg0: i32) -> (i32, i32) {
    %c0_i32 = arith.constant 0 : i32
    %c0_i32_0 = arith.constant 0 : i32
    %c0_i32_1 = arith.constant 0 : i32
    return %c0_i32, %c0_i32_0 : i32, i32
  }
  func.func @transform_5(%arg0: i32) -> (i32, i32) {
    %c0_i32 = arith.constant 0 : i32
    %c0_i32_0 = arith.constant 0 : i32
    %c0_i32_1 = arith.constant 0 : i32
    return %c0_i32, %c0_i32_0 : i32, i32
  }
  func.func @transform_6(%arg0: i32) -> (i32, i32) {
    %c0_i32 = arith.constant 0 : i32
    %c0_i32_0 = arith.constant 0 : i32
    %c0_i32_1 = arith.constant 0 : i32
    return %c0_i32, %c0_i32_0 : i32, i32
  }
  func.func @transform_7(%arg0: i32) -> (i32, i32) {
    %c0_i32 = arith.constant 0 : i32
    %c0_i32_0 = arith.constant 0 : i32
    %c0_i32_1 = arith.constant 0 : i32
    return %c0_i32, %c0_i32_0 : i32, i32
  }
  func.func @transform_8(%arg0: i32) -> (i32, i32) {
    %c0_i32 = arith.constant 0 : i32
    %c0_i32_0 = arith.constant 0 : i32
    %c0_i32_1 = arith.constant 0 : i32
    return %c0_i32, %c0_i32_0 : i32, i32
  }
  func.func @transform_9(%arg0: i32) -> (i32, i32) {
    %c0_i32 = arith.constant 0 : i32
    %c0_i32_0 = arith.constant 0 : i32
    return %arg0, %c0_i32 : i32, i32
  }
  func.func @transform_10(%arg0: i32) -> (i32, i32) {
    %c0_i32 = arith.constant 0 : i32
    %c0_i32_0 = arith.constant 0 : i32
    return %arg0, %c0_i32 : i32, i32
  }
  func.func @transform_11(%arg0: i32) -> (i32, i32) {
    %c0_i32 = arith.constant 0 : i32
    %c0_i32_0 = arith.constant 0 : i32
    return %arg0, %c0_i32 : i32, i32
  }
}

</mosaic_0001>

<llo_original>
// kernel: tpu_custom_call.1
$region0: #{tpu_custom_call.1}
  #allocation0 [shape = 'u32[]', space=smem, size = 0x4, offset = 0x4, fixed_abs, tag = 'smem constant byte address 0x4 - core index']
  #allocation1 [shape = 'u32[72,128]{1,0:T(1,128)}', space=vmem, size = 0x9000, scoped, tag = 'internal scratch']
  %s0 = inlined_call_operand.vmem [shape: f32[16,32], index: 0, kind: input, shape index: {}]
  %s1 = inlined_call_operand.vmem [shape: f32[32,64], index: 1, kind: input, shape index: {}]
  %s2 = inlined_call_operand.vmem [shape: f32[1,64], index: 2, kind: input, shape index: {}]
  %s3 = inlined_call_operand.vmem [shape: f32[64,48], index: 3, kind: input, shape index: {}]
  %s4 = inlined_call_operand.vmem [shape: f32[32,48], index: 4, kind: input, shape index: {}]
  %s5 = inlined_call_operand.vmem [shape: f32[1,48], index: 5, kind: input, shape index: {}]
  %s6 = inlined_call_operand.vmem [shape: f32[48,32], index: 6, kind: input, shape index: {}]
  %s7 = inlined_call_operand.vmem [shape: f32[32,32], index: 7, kind: input, shape index: {}]
  %s8 = inlined_call_operand.vmem [shape: f32[1,32], index: 8, kind: input, shape index: {}]
  %s9 = inlined_call_operand.hbm [shape: f32[16,64], index: 9, kind: output, shape index: {0}]
  %s10 = inlined_call_operand.hbm [shape: f32[16,48], index: 10, kind: output, shape index: {1}]
  %s11 = inlined_call_operand.hbm [shape: f32[16,32], index: 11, kind: output, shape index: {2}]
  %12 = xla_tuple %s9, %s10, %s11
  %s13 = sld [smem:[#allocation0]]
  $region62: #{tpu_custom_call.1} parent=0
    _
  %s15 = ssub.s32 1, %s13
  %s16 = scalar_select 0, %s15, %s13
  $region1: #{tpu_custom_call.1} parent=0
    #allocation2 [shape = 'u8[8192]{0}', space=vmem, size = 0x2000, scoped, tag = 'output window, operand 0, single buffered']
    #allocation3 [shape = 's32[1]{0}', space=sflag, size = 0x4, scoped, tag = 'scoped memory for tpu_custom_call.1']
    #allocation4 [shape = 'u8[8192]{0}', space=vmem, size = 0x2000, scoped, tag = 'output window, operand 1, single buffered']
    #allocation5 [shape = 's32[1]{0}', space=sflag, size = 0x4, scoped, tag = 'scoped memory for tpu_custom_call.1']
    #allocation6 [shape = 'u8[8192]{0}', space=vmem, size = 0x2000, scoped, tag = 'output window, operand 2, single buffered']
    %17 = vsyncpa [#allocation3], 0
    %18 = vsyncpa [#allocation5], 0
    // Predicated region
    $region2: #{tpu_custom_call.1} parent=1 // pred_check
      _
    $region3: #{tpu_custom_call.1} parent=1 // pred_check_branch
      %20 = sbr.rel (0) target = $region5
    $region4: #{tpu_custom_call.1} parent=1 // pred_region
      _
    $region5: #{tpu_custom_call.1} parent=1 // pred_fallthru
      _
    // Predicated region
    $region6: #{tpu_custom_call.1} parent=1 // pred_check
      _
    $region7: #{tpu_custom_call.1} parent=1 // pred_check_branch
      %22 = sbr.rel (0) target = $region9
    $region8: #{tpu_custom_call.1} parent=1 // pred_region
      _
    $region9: #{tpu_custom_call.1} parent=1 // pred_fallthru
      _
    // Predicated region
    $region10: #{tpu_custom_call.1} parent=1 // pred_check
      _
    $region11: #{tpu_custom_call.1} parent=1 // pred_check_branch
      %24 = sbr.rel (0) target = $region13
    $region12: #{tpu_custom_call.1} parent=1 // pred_region
      _
    $region13: #{tpu_custom_call.1} parent=1 // pred_fallthru
      _
    // Predicated region
    $region14: #{tpu_custom_call.1} parent=1 // pred_check
      _
    $region15: #{tpu_custom_call.1} parent=1 // pred_check_branch
      %26 = sbr.rel (0) target = $region17
    $region16: #{tpu_custom_call.1} parent=1 // pred_region
      _
    $region17: #{tpu_custom_call.1} parent=1 // pred_fallthru
      _
    // Predicated region
    $region18: #{tpu_custom_call.1} parent=1 // pred_check
      _
    $region19: #{tpu_custom_call.1} parent=1 // pred_check_branch
      %28 = sbr.rel (0) target = $region21
    $region20: #{tpu_custom_call.1} parent=1 // pred_region
      _
    $region21: #{tpu_custom_call.1} parent=1 // pred_fallthru
      _
    // Predicated region
    $region22: #{tpu_custom_call.1} parent=1 // pred_check
      _
    $region23: #{tpu_custom_call.1} parent=1 // pred_check_branch
      %30 = sbr.rel (0) target = $region25
    $region24: #{tpu_custom_call.1} parent=1 // pred_region
      _
    $region25: #{tpu_custom_call.1} parent=1 // pred_fallthru
      _
    // Predicated region
    $region26: #{tpu_custom_call.1} parent=1 // pred_check
      _
    $region27: #{tpu_custom_call.1} parent=1 // pred_check_branch
      %32 = sbr.rel (0) target = $region29
    $region28: #{tpu_custom_call.1} parent=1 // pred_region
      _
    $region29: #{tpu_custom_call.1} parent=1 // pred_fallthru
      _
    // Predicated region
    $region30: #{tpu_custom_call.1} parent=1 // pred_check
      _
    $region31: #{tpu_custom_call.1} parent=1 // pred_check_branch
      %34 = sbr.rel (0) target = $region33
    $region32: #{tpu_custom_call.1} parent=1 // pred_region
      _
    $region33: #{tpu_custom_call.1} parent=1 // pred_fallthru
      _
    // Predicated region
    $region34: #{tpu_custom_call.1} parent=1 // pred_check
      _
    $region35: #{tpu_custom_call.1} parent=1 // pred_check_branch
      %36 = sbr.rel (0) target = $region37
    $region36: #{tpu_custom_call.1} parent=1 // pred_region
      _
    $region37: #{tpu_custom_call.1} parent=1 // pred_fallthru
      _
    %v37 = vld [vmem:[%s0] sm:$0xff]
    %v38 = vld [vmem:[%s0 + $0x8] sm:$0xff]
    %v39 = vld [vmem:[%s1] sm:$0xff]
    %v40 = vld [vmem:[%s1 + $0x8] sm:$0xff]
    %v41 = vld [vmem:[%s1 + $0x10] sm:$0xff]
    %v42 = vld [vmem:[%s1 + $0x18] sm:$0xff]
    %v43 = vld [vmem:[%s2] sm:$0x1]
    %v45 = vperm.slane %v43, 0
    %vm47 = vcmask 261120
    %v49 = vsel %vm47, %v37, 0
    %v52 = vsel %vm47, %v38, 0
    %54 = vmatpush.msra.mxu0 0.0
    %55 = vmatpush.msra.mxu0 0.0
    %56 = vmatpush.msra.mxu0 0.0
    %57 = vmatpush.msra.mxu0 0.0
    %58 = vmatpush.msra.mxu0 0.0
    %59 = vmatpush.msra.mxu0 0.0
    %60 = vmatpush.msra.mxu0 0.0
    %61 = vmatpush.msra.mxu0 0.0
    %62 = vmatpush.msra.mxu0 0.0
    %63 = vmatpush.msra.mxu0 0.0
    %64 = vmatpush.msra.mxu0 0.0
    %65 = vmatpush.msra.mxu0 0.0
    %66 = vmatpush.msra.mxu0 %v42
    %67 = vmatpush.msra.mxu0 %v41
    %68 = vmatpush.msra.mxu0 %v40
    %69 = vmatpush.msra.mxu0 %v39
    %70 = vmatmul.f32.gmra.mxu0 %v49
    %v71 = vpop.f32.mrf.mxu0
    %v72 = vadd.f32 %v45, %v71
    %73 = vmatmul.f32.gmra.mxu0 %v52
    %v74 = vpop.f32.mrf.mxu0
    %v75 = vadd.f32 %v45, %v74
    %76 = vdwg.mxu0
    %v77 = vmax.f32 %v72, 0.0
    %v78 = vmax.f32 %v75, 0.0
    %vm79 = vcmask 523264
    %80 = vst.msk [vmem:[#allocation2] sm:$0xff] %vm79, %v77
    %81 = vst.msk [vmem:[#allocation2 + $0x8] sm:$0xff] %vm79, %v78
    %v82 = vld [vmem:[%s0] sm:$0xff]
    %v83 = vld [vmem:[%s0 + $0x8] sm:$0xff]
    %v84 = vld [vmem:[%s3] sm:$0xff]
    %v85 = vld [vmem:[%s3 + $0x8] sm:$0xff]
    %v86 = vld [vmem:[%s3 + $0x10] sm:$0xff]
    %v87 = vld [vmem:[%s3 + $0x18] sm:$0xff]
    %v88 = vld [vmem:[%s3 + $0x20] sm:$0xff]
    %v89 = vld [vmem:[%s3 + $0x28] sm:$0xff]
    %v90 = vld [vmem:[%s3 + $0x30] sm:$0xff]
    %v91 = vld [vmem:[%s3 + $0x38] sm:$0xff]
    %v92 = vld [vmem:[%s4] sm:$0xff]
    %v93 = vld [vmem:[%s4 + $0x8] sm:$0xff]
    %v94 = vld [vmem:[%s4 + $0x10] sm:$0xff]
    %v95 = vld [vmem:[%s4 + $0x18] sm:$0xff]
    %v97 = vsel %vm47, %v82, 0
    %v100 = vsel %vm47, %v83, 0
    %102 = vmatpush.msra.mxu0 0.0
    %103 = vmatpush.msra.mxu0 0.0
    %104 = vmatpush.msra.mxu0 0.0
    %105 = vmatpush.msra.mxu0 0.0
    %106 = vmatpush.msra.mxu0 0.0
    %107 = vmatpush.msra.mxu0 0.0
    %108 = vmatpush.msra.mxu0 0.0
    %109 = vmatpush.msra.mxu0 0.0
    %110 = vmatpush.msra.mxu0 0.0
    %111 = vmatpush.msra.mxu0 0.0
    %112 = vmatpush.msra.mxu0 0.0
    %113 = vmatpush.msra.mxu0 0.0
    %114 = vmatpush.msra.mxu0 %v95
    %115 = vmatpush.msra.mxu0 %v94
    %116 = vmatpush.msra.mxu0 %v93
    %117 = vmatpush.msra.mxu0 %v92
    %118 = vmatmul.f32.gmra.mxu0 %v97
    %v119 = vpop.f32.mrf.mxu0
    %v120 = vadd.f32 0.0, %v119
    %121 = vmatmul.f32.gmra.mxu0 %v100
    %v122 = vpop.f32.mrf.mxu0
    %v123 = vadd.f32 0.0, %v122
    %124 = vdwg.mxu0
    %v126 = vsel %vm79, %v77, 0
    %v129 = vsel %vm79, %v78, 0
    %131 = vmatpush.msra.mxu0 0.0
    %132 = vmatpush.msra.mxu0 0.0
    %133 = vmatpush.msra.mxu0 0.0
    %134 = vmatpush.msra.mxu0 0.0
    %135 = vmatpush.msra.mxu0 0.0
    %136 = vmatpush.msra.mxu0 0.0
    %137 = vmatpush.msra.mxu0 0.0
    %138 = vmatpush.msra.mxu0 0.0
    %139 = vmatpush.msra.mxu0 %v91
    %140 = vmatpush.msra.mxu0 %v90
    %141 = vmatpush.msra.mxu0 %v89
    %142 = vmatpush.msra.mxu0 %v88
    %143 = vmatpush.msra.mxu0 %v87
    %144 = vmatpush.msra.mxu0 %v86
    %145 = vmatpush.msra.mxu0 %v85
    %146 = vmatpush.msra.mxu0 %v84
    %147 = vmatmul.f32.gmra.mxu0 %v126
    %v148 = vpop.f32.mrf.mxu0
    %v149 = vadd.f32 %v120, %v148
    %150 = vmatmul.f32.gmra.mxu0 %v129
    %v151 = vpop.f32.mrf.mxu0
    %v152 = vadd.f32 %v123, %v151
    %153 = vdwg.mxu0
    %v154 = vld [vmem:[%s5] sm:$0x1]
    %v156 = vperm.slane %v154, 0
    %v158 = vadd.f32 %v149, %v156
    %v159 = vadd.f32 %v152, %v156
    %v160 = vmax.f32 %v158, 0.0
    %v161 = vmax.f32 %v159, 0.0
    %vm162 = vcmask 392192
    %163 = vst.msk [vmem:[#allocation4] sm:$0xff] %vm162, %v160
    %164 = vst.msk [vmem:[#allocation4 + $0x8] sm:$0xff] %vm162, %v161
    %v165 = vld [vmem:[%s0] sm:$0xff]
    %v166 = vld [vmem:[%s0 + $0x8] sm:$0xff]
    %v167 = vld [vmem:[%s6] sm:$0xff]
    %v168 = vld [vmem:[%s6 + $0x8] sm:$0xff]
    %v169 = vld [vmem:[%s6 + $0x10] sm:$0xff]
    %v170 = vld [vmem:[%s6 + $0x18] sm:$0xff]
    %v171 = vld [vmem:[%s6 + $0x20] sm:$0xff]
    %v172 = vld [vmem:[%s6 + $0x28] sm:$0xff]
    %v173 = vld [vmem:[%s7] sm:$0xff]
    %v174 = vld [vmem:[%s7 + $0x8] sm:$0xff]
    %v175 = vld [vmem:[%s7 + $0x10] sm:$0xff]
    %v176 = vld [vmem:[%s7 + $0x18] sm:$0xff]
    %v178 = vsel %vm47, %v165, 0
    %v181 = vsel %vm47, %v166, 0
    %183 = vmatpush.msra.mxu0 0.0
    %184 = vmatpush.msra.mxu0 0.0
    %185 = vmatpush.msra.mxu0 0.0
    %186 = vmatpush.msra.mxu0 0.0
    %187 = vmatpush.msra.mxu0 0.0
    %188 = vmatpush.msra.mxu0 0.0
    %189 = vmatpush.msra.mxu0 0.0
    %190 = vmatpush.msra.mxu0 0.0
    %191 = vmatpush.msra.mxu0 0.0
    %192 = vmatpush.msra.mxu0 0.0
    %193 = vmatpush.msra.mxu0 0.0
    %194 = vmatpush.msra.mxu0 0.0
    %195 = vmatpush.msra.mxu0 %v176
    %196 = vmatpush.msra.mxu0 %v175
    %197 = vmatpush.msra.mxu0 %v174
    %198 = vmatpush.msra.mxu0 %v173
    %199 = vmatmul.f32.gmra.mxu0 %v178
    %v200 = vpop.f32.mrf.mxu0
    %v201 = vadd.f32 0.0, %v200
    %202 = vmatmul.f32.gmra.mxu0 %v181
    %v203 = vpop.f32.mrf.mxu0
    %v204 = vadd.f32 0.0, %v203
    %205 = vdwg.mxu0
    %v207 = vsel %vm162, %v160, 0
    %v210 = vsel %vm162, %v161, 0
    %212 = vmatpush.msra.mxu0 0.0
    %213 = vmatpush.msra.mxu0 0.0
    %214 = vmatpush.msra.mxu0 0.0
    %215 = vmatpush.msra.mxu0 0.0
    %216 = vmatpush.msra.mxu0 0.0
    %217 = vmatpush.msra.mxu0 0.0
    %218 = vmatpush.msra.mxu0 0.0
    %219 = vmatpush.msra.mxu0 0.0
    %220 = vmatpush.msra.mxu0 0.0
    %221 = vmatpush.msra.mxu0 0.0
    %222 = vmatpush.msra.mxu0 %v172
    %223 = vmatpush.msra.mxu0 %v171
    %224 = vmatpush.msra.mxu0 %v170
    %225 = vmatpush.msra.mxu0 %v169
    %226 = vmatpush.msra.mxu0 %v168
    %227 = vmatpush.msra.mxu0 %v167
    %228 = vmatmul.f32.gmra.mxu0 %v207
    %v229 = vpop.f32.mrf.mxu0
    %v230 = vadd.f32 %v201, %v229
    %231 = vmatmul.f32.gmra.mxu0 %v210
    %v232 = vpop.f32.mrf.mxu0
    %v233 = vadd.f32 %v204, %v232
    %234 = vdwg.mxu0
    %v235 = vld [vmem:[%s8] sm:$0x1]
    %v237 = vperm.slane %v235, 0
    %v239 = vadd.f32 %v230, %v237
    %v240 = vadd.f32 %v233, %v237
    %v241 = vmax.f32 %v239, 0.0
    %v242 = vmax.f32 %v240, 0.0
    %243 = vst.msk [vmem:[#allocation6] sm:$0xff] %vm47, %v241
    %244 = vst.msk [vmem:[#allocation6 + $0x8] sm:$0xff] %vm47, %v242
    // Predicated region
    $region38: #{tpu_custom_call.1} parent=1 // pred_check
      _
    $region39: #{tpu_custom_call.1} parent=1 // pred_check_branch
      %246 = sbr.rel (0) target = $region41
    $region40: #{tpu_custom_call.1} parent=1 // pred_region
      %248 = vsyncadd [#allocation3], 0
      %s249 = sshll.u32 [#allocation2], 4
      %s250 = int_to_ptr.vmem [resolvable:$true] %s249
      %s251 = sshll.u32 %s9, 4
      %s252 = int_to_ptr.hbm [resolvable:$true] %s251
      %257 = dma.vmem_to_hbm [thread:$0]  %s250, 256, %s252, [#allocation3], 128, 128, 8
    $region41: #{tpu_custom_call.1} parent=1 // pred_fallthru
      _
    // Predicated region
    $region42: #{tpu_custom_call.1} parent=1 // pred_check
      _
    $region43: #{tpu_custom_call.1} parent=1 // pred_check_branch
      %259 = sbr.rel (0) target = $region45
    $region44: #{tpu_custom_call.1} parent=1 // pred_region
      %261 = vsyncadd [#allocation5], 0
      %s262 = sshll.u32 [#allocation4], 4
      %s263 = int_to_ptr.vmem [resolvable:$true] %s262
      %s264 = sshll.u32 %s10, 4
      %s265 = int_to_ptr.hbm [resolvable:$true] %s264
      %270 = dma.vmem_to_hbm [thread:$0]  %s263, 256, %s265, [#allocation5], 128, 128, 8
    $region45: #{tpu_custom_call.1} parent=1 // pred_fallthru
      _
    // Predicated region
    $region46: #{tpu_custom_call.1} parent=1 // pred_check
      _
    $region47: #{tpu_custom_call.1} parent=1 // pred_check_branch
      %272 = sbr.rel (0) target = $region49
    $region48: #{tpu_custom_call.1} parent=1 // pred_region
      %274 = vsyncadd [#allocation5], 0
      %s275 = sshll.u32 [#allocation6], 4
      %s276 = int_to_ptr.vmem [resolvable:$true] %s275
      %s277 = sshll.u32 %s11, 4
      %s278 = int_to_ptr.hbm [resolvable:$true] %s277
      %283 = dma.vmem_to_hbm [thread:$0]  %s276, 256, %s278, [#allocation5], 128, 128, 8
    $region49: #{tpu_custom_call.1} parent=1 // pred_fallthru
      _
    // Predicated region
    $region50: #{tpu_custom_call.1} parent=1 // pred_check
      _
    $region51: #{tpu_custom_call.1} parent=1 // pred_check_branch
      %285 = sbr.rel (0) target = $region53
    $region52: #{tpu_custom_call.1} parent=1 // pred_region
      %287 = dma.done [#allocation3], 256
    $region53: #{tpu_custom_call.1} parent=1 // pred_fallthru
      _
    // Predicated region
    $region54: #{tpu_custom_call.1} parent=1 // pred_check
      _
    $region55: #{tpu_custom_call.1} parent=1 // pred_check_branch
      %289 = sbr.rel (0) target = $region57
    $region56: #{tpu_custom_call.1} parent=1 // pred_region
      %291 = dma.done [#allocation5], 256
    $region57: #{tpu_custom_call.1} parent=1 // pred_fallthru
      _
    // Predicated region
    $region58: #{tpu_custom_call.1} parent=1 // pred_check
      _
    $region59: #{tpu_custom_call.1} parent=1 // pred_check_branch
      %293 = sbr.rel (0) target = $region61
    $region60: #{tpu_custom_call.1} parent=1 // pred_region
      %295 = dma.done [#allocation5], 256
    $region61: #{tpu_custom_call.1} parent=1 // pred_fallthru
      _
    %296 = vsyncpa [#allocation3], 1
    %297 = vsyncpa [#allocation5], 1

// kernel: tpu_custom_call.1
$region0: #{tpu_custom_call.1}
  #allocation0 [shape = 'u32[]', space=smem, size = 0x4, offset = 0x4, fixed_abs, tag = 'smem constant byte address 0x4 - core index']
  #allocation1 [shape = 'u32[72,128]{1,0:T(1,128)}', space=vmem, size = 0x9000, scoped, tag = 'internal scratch']
  %s0 = inlined_call_operand.vmem [shape: f32[16,32], index: 0, kind: input, shape index: {}]
  %s1 = inlined_call_operand.vmem [shape: f32[32,64], index: 1, kind: input, shape index: {}]
  %s2 = inlined_call_operand.vmem [shape: f32[1,64], index: 2, kind: input, shape index: {}]
  %s3 = inlined_call_operand.vmem [shape: f32[64,48], index: 3, kind: input, shape index: {}]
  %s4 = inlined_call_operand.vmem [shape: f32[32,48], index: 4, kind: input, shape index: {}]
  %s5 = inlined_call_operand.vmem [shape: f32[1,48], index: 5, kind: input, shape index: {}]
  %s6 = inlined_call_operand.vmem [shape: f32[48,32], index: 6, kind: input, shape index: {}]
  %s7 = inlined_call_operand.vmem [shape: f32[32,32], index: 7, kind: input, shape index: {}]
  %s8 = inlined_call_operand.vmem [shape: f32[1,32], index: 8, kind: input, shape index: {}]
  %s9 = inlined_call_operand.hbm [shape: f32[16,64], index: 9, kind: output, shape index: {0}]
  %s10 = inlined_call_operand.hbm [shape: f32[16,48], index: 10, kind: output, shape index: {1}]
  %s11 = inlined_call_operand.hbm [shape: f32[16,32], index: 11, kind: output, shape index: {2}]
  %12 = xla_tuple %s9, %s10, %s11
  %s13 = sld [smem:[#allocation0]]
  $region62: #{tpu_custom_call.1} parent=0
    _
  %s15 = ssub.s32 1, %s13
  %s16 = scalar_select 0, %s15, %s13
  $region1: #{tpu_custom_call.1} parent=0
    #allocation2 [shape = 'u8[8192]{0}', space=vmem, size = 0x2000, scoped, tag = 'output window, operand 0, single buffered']
    #allocation3 [shape = 's32[1]{0}', space=sflag, size = 0x4, scoped, tag = 'scoped memory for tpu_custom_call.1']
    #allocation4 [shape = 'u8[8192]{0}', space=vmem, size = 0x2000, scoped, tag = 'output window, operand 1, single buffered']
    #allocation5 [shape = 's32[1]{0}', space=sflag, size = 0x4, scoped, tag = 'scoped memory for tpu_custom_call.1']
    #allocation6 [shape = 'u8[8192]{0}', space=vmem, size = 0x2000, scoped, tag = 'output window, operand 2, single buffered']
    %17 = vsyncpa [#allocation3], 0
    %18 = vsyncpa [#allocation5], 0
    // Predicated region
    $region2: #{tpu_custom_call.1} parent=1 // pred_check
      _
    $region3: #{tpu_custom_call.1} parent=1 // pred_check_branch
      %20 = sbr.rel (0) target = $region5
    $region4: #{tpu_custom_call.1} parent=1 // pred_region
      _
    $region5: #{tpu_custom_call.1} parent=1 // pred_fallthru
      _
    // Predicated region
    $region6: #{tpu_custom_call.1} parent=1 // pred_check
      _
    $region7: #{tpu_custom_call.1} parent=1 // pred_check_branch
      %22 = sbr.rel (0) target = $region9
    $region8: #{tpu_custom_call.1} parent=1 // pred_region
      _
    $region9: #{tpu_custom_call.1} parent=1 // pred_fallthru
      _
    // Predicated region
    $region10: #{tpu_custom_call.1} parent=1 // pred_check
      _
    $region11: #{tpu_custom_call.1} parent=1 // pred_check_branch
      %24 = sbr.rel (0) target = $region13
    $region12: #{tpu_custom_call.1} parent=1 // pred_region
      _
    $region13: #{tpu_custom_call.1} parent=1 // pred_fallthru
      _
    // Predicated region
    $region14: #{tpu_custom_call.1} parent=1 // pred_check
      _
    $region15: #{tpu_custom_call.1} parent=1 // pred_check_branch
      %26 = sbr.rel (0) target = $region17
    $region16: #{tpu_custom_call.1} parent=1 // pred_region
      _
    $region17: #{tpu_custom_call.1} parent=1 // pred_fallthru
      _
    // Predicated region
    $region18: #{tpu_custom_call.1} parent=1 // pred_check
      _
    $region19: #{tpu_custom_call.1} parent=1 // pred_check_branch
      %28 = sbr.rel (0) target = $region21
    $region20: #{tpu_custom_call.1} parent=1 // pred_region
      _
    $region21: #{tpu_custom_call.1} parent=1 // pred_fallthru
      _
    // Predicated region
    $region22: #{tpu_custom_call.1} parent=1 // pred_check
      _
    $region23: #{tpu_custom_call.1} parent=1 // pred_check_branch
      %30 = sbr.rel (0) target = $region25
    $region24: #{tpu_custom_call.1} parent=1 // pred_region
      _
    $region25: #{tpu_custom_call.1} parent=1 // pred_fallthru
      _
    // Predicated region
    $region26: #{tpu_custom_call.1} parent=1 // pred_check
      _
    $region27: #{tpu_custom_call.1} parent=1 // pred_check_branch
      %32 = sbr.rel (0) target = $region29
    $region28: #{tpu_custom_call.1} parent=1 // pred_region
      _
    $region29: #{tpu_custom_call.1} parent=1 // pred_fallthru
      _
    // Predicated region
    $region30: #{tpu_custom_call.1} parent=1 // pred_check
      _
    $region31: #{tpu_custom_call.1} parent=1 // pred_check_branch
      %34 = sbr.rel (0) target = $region33
    $region32: #{tpu_custom_call.1} parent=1 // pred_region
      _
    $region33: #{tpu_custom_call.1} parent=1 // pred_fallthru
      _
    // Predicated region
    $region34: #{tpu_custom_call.1} parent=1 // pred_check
      _
    $region35: #{tpu_custom_call.1} parent=1 // pred_check_branch
      %36 = sbr.rel (0) target = $region37
    $region36: #{tpu_custom_call.1} parent=1 // pred_region
      _
    $region37: #{tpu_custom_call.1} parent=1 // pred_fallthru
      _
    %v37 = vld [vmem:[%s0] sm:$0xff]
    %v38 = vld [vmem:[%s0 + $0x8] sm:$0xff]
    %v39 = vld [vmem:[%s1] sm:$0xff]
    %v40 = vld [vmem:[%s1 + $0x8] sm:$0xff]
    %v41 = vld [vmem:[%s1 + $0x10] sm:$0xff]
    %v42 = vld [vmem:[%s1 + $0x18] sm:$0xff]
    %v43 = vld [vmem:[%s2] sm:$0x1]
    %v45 = vperm.slane %v43, 0
    %vm47 = vcmask 261120
    %v49 = vsel %vm47, %v37, 0
    %v52 = vsel %vm47, %v38, 0
    %54 = vmatpush.msra.mxu0 0.0
    %55 = vmatpush.msra.mxu0 0.0
    %56 = vmatpush.msra.mxu0 0.0
    %57 = vmatpush.msra.mxu0 0.0
    %58 = vmatpush.msra.mxu0 0.0
    %59 = vmatpush.msra.mxu0 0.0
    %60 = vmatpush.msra.mxu0 0.0
    %61 = vmatpush.msra.mxu0 0.0
    %62 = vmatpush.msra.mxu0 0.0
    %63 = vmatpush.msra.mxu0 0.0
    %64 = vmatpush.msra.mxu0 0.0
    %65 = vmatpush.msra.mxu0 0.0
    %66 = vmatpush.msra.mxu0 %v42
    %67 = vmatpush.msra.mxu0 %v41
    %68 = vmatpush.msra.mxu0 %v40
    %69 = vmatpush.msra.mxu0 %v39
    %70 = vmatmul.f32.gmra.mxu0 %v49
    %v71 = vpop.f32.mrf.mxu0
    %v72 = vadd.f32 %v45, %v71
    %73 = vmatmul.f32.gmra.mxu0 %v52
    %v74 = vpop.f32.mrf.mxu0
    %v75 = vadd.f32 %v45, %v74
    %76 = vdwg.mxu0
    %v77 = vmax.f32 %v72, 0.0
    %v78 = vmax.f32 %v75, 0.0
    %vm79 = vcmask 523264
    %80 = vst.msk [vmem:[#allocation2] sm:$0xff] %vm79, %v77
    %81 = vst.msk [vmem:[#allocation2 + $0x8] sm:$0xff] %vm79, %v78
    %v82 = vld [vmem:[%s0] sm:$0xff]
    %v83 = vld [vmem:[%s0 + $0x8] sm:$0xff]
    %v84 = vld [vmem:[%s3] sm:$0xff]
    %v85 = vld [vmem:[%s3 + $0x8] sm:$0xff]
    %v86 = vld [vmem:[%s3 + $0x10] sm:$0xff]
    %v87 = vld [vmem:[%s3 + $0x18] sm:$0xff]
    %v88 = vld [vmem:[%s3 + $0x20] sm:$0xff]
    %v89 = vld [vmem:[%s3 + $0x28] sm:$0xff]
    %v90 = vld [vmem:[%s3 + $0x30] sm:$0xff]
    %v91 = vld [vmem:[%s3 + $0x38] sm:$0xff]
    %v92 = vld [vmem:[%s4] sm:$0xff]
    %v93 = vld [vmem:[%s4 + $0x8] sm:$0xff]
    %v94 = vld [vmem:[%s4 + $0x10] sm:$0xff]
    %v95 = vld [vmem:[%s4 + $0x18] sm:$0xff]
    %v97 = vsel %vm47, %v82, 0
    %v100 = vsel %vm47, %v83, 0
    %102 = vmatpush.msra.mxu0 0.0
    %103 = vmatpush.msra.mxu0 0.0
    %104 = vmatpush.msra.mxu0 0.0
    %105 = vmatpush.msra.mxu0 0.0
    %106 = vmatpush.msra.mxu0 0.0
    %107 = vmatpush.msra.mxu0 0.0
    %108 = vmatpush.msra.mxu0 0.0
    %109 = vmatpush.msra.mxu0 0.0
    %110 = vmatpush.msra.mxu0 0.0
    %111 = vmatpush.msra.mxu0 0.0
    %112 = vmatpush.msra.mxu0 0.0
    %113 = vmatpush.msra.mxu0 0.0
    %114 = vmatpush.msra.mxu0 %v95
    %115 = vmatpush.msra.mxu0 %v94
    %116 = vmatpush.msra.mxu0 %v93
    %117 = vmatpush.msra.mxu0 %v92
    %118 = vmatmul.f32.gmra.mxu0 %v97
    %v119 = vpop.f32.mrf.mxu0
    %v120 = vadd.f32 0.0, %v119
    %121 = vmatmul.f32.gmra.mxu0 %v100
    %v122 = vpop.f32.mrf.mxu0
    %v123 = vadd.f32 0.0, %v122
    %124 = vdwg.mxu0
    %v126 = vsel %vm79, %v77, 0
    %v129 = vsel %vm79, %v78, 0
    %131 = vmatpush.msra.mxu0 0.0
    %132 = vmatpush.msra.mxu0 0.0
    %133 = vmatpush.msra.mxu0 0.0
    %134 = vmatpush.msra.mxu0 0.0
    %135 = vmatpush.msra.mxu0 0.0
    %136 = vmatpush.msra.mxu0 0.0
    %137 = vmatpush.msra.mxu0 0.0
    %138 = vmatpush.msra.mxu0 0.0
    %139 = vmatpush.msra.mxu0 %v91
    %140 = vmatpush.msra.mxu0 %v90
    %141 = vmatpush.msra.mxu0 %v89
    %142 = vmatpush.msra.mxu0 %v88
    %143 = vmatpush.msra.mxu0 %v87
    %144 = vmatpush.msra.mxu0 %v86
    %145 = vmatpush.msra.mxu0 %v85
    %146 = vmatpush.msra.mxu0 %v84
    %147 = vmatmul.f32.gmra.mxu0 %v126
    %v148 = vpop.f32.mrf.mxu0
    %v149 = vadd.f32 %v120, %v148
    %150 = vmatmul.f32.gmra.mxu0 %v129
    %v151 = vpop.f32.mrf.mxu0
    %v152 = vadd.f32 %v123, %v151
    %153 = vdwg.mxu0
    %v154 = vld [vmem:[%s5] sm:$0x1]
    %v156 = vperm.slane %v154, 0
    %v158 = vadd.f32 %v149, %v156
    %v159 = vadd.f32 %v152, %v156
    %v160 = vmax.f32 %v158, 0.0
    %v161 = vmax.f32 %v159, 0.0
    %vm162 = vcmask 392192
    %163 = vst.msk [vmem:[#allocation4] sm:$0xff] %vm162, %v160
    %164 = vst.msk [vmem:[#allocation4 + $0x8] sm:$0xff] %vm162, %v161
    %v165 = vld [vmem:[%s0] sm:$0xff]
    %v166 = vld [vmem:[%s0 + $0x8] sm:$0xff]
    %v167 = vld [vmem:[%s6] sm:$0xff]
    %v168 = vld [vmem:[%s6 + $0x8] sm:$0xff]
    %v169 = vld [vmem:[%s6 + $0x10] sm:$0xff]
    %v170 = vld [vmem:[%s6 + $0x18] sm:$0xff]
    %v171 = vld [vmem:[%s6 + $0x20] sm:$0xff]
    %v172 = vld [vmem:[%s6 + $0x28] sm:$0xff]
    %v173 = vld [vmem:[%s7] sm:$0xff]
    %v174 = vld [vmem:[%s7 + $0x8] sm:$0xff]
    %v175 = vld [vmem:[%s7 + $0x10] sm:$0xff]
    %v176 = vld [vmem:[%s7 + $0x18] sm:$0xff]
    %v178 = vsel %vm47, %v165, 0
    %v181 = vsel %vm47, %v166, 0
    %183 = vmatpush.msra.mxu0 0.0
    %184 = vmatpush.msra.mxu0 0.0
    %185 = vmatpush.msra.mxu0 0.0
    %186 = vmatpush.msra.mxu0 0.0
    %187 = vmatpush.msra.mxu0 0.0
    %188 = vmatpush.msra.mxu0 0.0
    %189 = vmatpush.msra.mxu0 0.0
    %190 = vmatpush.msra.mxu0 0.0
    %191 = vmatpush.msra.mxu0 0.0
    %192 = vmatpush.msra.mxu0 0.0
    %193 = vmatpush.msra.mxu0 0.0
    %194 = vmatpush.msra.mxu0 0.0
    %195 = vmatpush.msra.mxu0 %v176
    %196 = vmatpush.msra.mxu0 %v175
    %197 = vmatpush.msra.mxu0 %v174
    %198 = vmatpush.msra.mxu0 %v173
    %199 = vmatmul.f32.gmra.mxu0 %v178
    %v200 = vpop.f32.mrf.mxu0
    %v201 = vadd.f32 0.0, %v200
    %202 = vmatmul.f32.gmra.mxu0 %v181
    %v203 = vpop.f32.mrf.mxu0
    %v204 = vadd.f32 0.0, %v203
    %205 = vdwg.mxu0
    %v207 = vsel %vm162, %v160, 0
    %v210 = vsel %vm162, %v161, 0
    %212 = vmatpush.msra.mxu0 0.0
    %213 = vmatpush.msra.mxu0 0.0
    %214 = vmatpush.msra.mxu0 0.0
    %215 = vmatpush.msra.mxu0 0.0
    %216 = vmatpush.msra.mxu0 0.0
    %217 = vmatpush.msra.mxu0 0.0
    %218 = vmatpush.msra.mxu0 0.0
    %219 = vmatpush.msra.mxu0 0.0
    %220 = vmatpush.msra.mxu0 0.0
    %221 = vmatpush.msra.mxu0 0.0
    %222 = vmatpush.msra.mxu0 %v172
    %223 = vmatpush.msra.mxu0 %v171
    %224 = vmatpush.msra.mxu0 %v170
    %225 = vmatpush.msra.mxu0 %v169
    %226 = vmatpush.msra.mxu0 %v168
    %227 = vmatpush.msra.mxu0 %v167
    %228 = vmatmul.f32.gmra.mxu0 %v207
    %v229 = vpop.f32.mrf.mxu0
    %v230 = vadd.f32 %v201, %v229
    %231 = vmatmul.f32.gmra.mxu0 %v210
    %v232 = vpop.f32.mrf.mxu0
    %v233 = vadd.f32 %v204, %v232
    %234 = vdwg.mxu0
    %v235 = vld [vmem:[%s8] sm:$0x1]
    %v237 = vperm.slane %v235, 0
    %v239 = vadd.f32 %v230, %v237
    %v240 = vadd.f32 %v233, %v237
    %v241 = vmax.f32 %v239, 0.0
    %v242 = vmax.f32 %v240, 0.0
    %243 = vst.msk [vmem:[#allocation6] sm:$0xff] %vm47, %v241
    %244 = vst.msk [vmem:[#allocation6 + $0x8] sm:$0xff] %vm47, %v242
    // Predicated region
    $region38: #{tpu_custom_call.1} parent=1 // pred_check
      _
    $region39: #{tpu_custom_call.1} parent=1 // pred_check_branch
      %246 = sbr.rel (0) target = $region41
    $region40: #{tpu_custom_call.1} parent=1 // pred_region
      %248 = vsyncadd [#allocation3], 0
      %s249 = sshll.u32 [#allocation2], 4
      %s250 = int_to_ptr.vmem [resolvable:$true] %s249
      %s251 = sshll.u32 %s9, 4
      %s252 = int_to_ptr.hbm [resolvable:$true] %s251
      %257 = dma.vmem_to_hbm [thread:$0]  %s250, 256, %s252, [#allocation3], 128, 128, 8
    $region41: #{tpu_custom_call.1} parent=1 // pred_fallthru
      _
    // Predicated region
    $region42: #{tpu_custom_call.1} parent=1 // pred_check
      _
    $region43: #{tpu_custom_call.1} parent=1 // pred_check_branch
      %259 = sbr.rel (0) target = $region45
    $region44: #{tpu_custom_call.1} parent=1 // pred_region
      %261 = vsyncadd [#allocation5], 0
      %s262 = sshll.u32 [#allocation4], 4
      %s263 = int_to_ptr.vmem [resolvable:$true] %s262
      %s264 = sshll.u32 %s10, 4
      %s265 = int_to_ptr.hbm [resolvable:$true] %s264
      %270 = dma.vmem_to_hbm [thread:$0]  %s263, 256, %s265, [#allocation5], 128, 128, 8
    $region45: #{tpu_custom_call.1} parent=1 // pred_fallthru
      _
    // Predicated region
    $region46: #{tpu_custom_call.1} parent=1 // pred_check
      _
    $region47: #{tpu_custom_call.1} parent=1 // pred_check_branch
      %272 = sbr.rel (0) target = $region49
    $region48: #{tpu_custom_call.1} parent=1 // pred_region
      %274 = vsyncadd [#allocation5], 0
      %s275 = sshll.u32 [#allocation6], 4
      %s276 = int_to_ptr.vmem [resolvable:$true] %s275
      %s277 = sshll.u32 %s11, 4
      %s278 = int_to_ptr.hbm [resolvable:$true] %s277
      %283 = dma.vmem_to_hbm [thread:$0]  %s276, 256, %s278, [#allocation5], 128, 128, 8
    $region49: #{tpu_custom_call.1} parent=1 // pred_fallthru
      _
    // Predicated region
    $region50: #{tpu_custom_call.1} parent=1 // pred_check
      _
    $region51: #{tpu_custom_call.1} parent=1 // pred_check_branch
      %285 = sbr.rel (0) target = $region53
    $region52: #{tpu_custom_call.1} parent=1 // pred_region
      %287 = dma.done [#allocation3], 256
    $region53: #{tpu_custom_call.1} parent=1 // pred_fallthru
      _
    // Predicated region
    $region54: #{tpu_custom_call.1} parent=1 // pred_check
      _
    $region55: #{tpu_custom_call.1} parent=1 // pred_check_branch
      %289 = sbr.rel (0) target = $region57
    $region56: #{tpu_custom_call.1} parent=1 // pred_region
      %291 = dma.done [#allocation5], 256
    $region57: #{tpu_custom_call.1} parent=1 // pred_fallthru
      _
    // Predicated region
    $region58: #{tpu_custom_call.1} parent=1 // pred_check
      _
    $region59: #{tpu_custom_call.1} parent=1 // pred_check_branch
      %293 = sbr.rel (0) target = $region61
    $region60: #{tpu_custom_call.1} parent=1 // pred_region
      %295 = dma.done [#allocation5], 256
    $region61: #{tpu_custom_call.1} parent=1 // pred_fallthru
      _
    %296 = vsyncpa [#allocation3], 1
    %297 = vsyncpa [#allocation5], 1

</llo_original>
